<compile_context>
chip_gen: v7x
topology: tpu7x:2x2x1
jax: 0.10.0
libtpu: 0.0.40
codegen_flags: <defaults>
</compile_context>

<pallas_src>
import math

import jax
import jax.numpy as jnp
from jax.experimental import pallas as pl
from jax.experimental.pallas import tpu as pltpu


def _round_up(x, m):
    return ((x + m - 1) // m) * m


def token_embedding_kernel(x_ref, w_ref, o_ref):
    # x_ref: (TB, L, C)   w_ref: (3*C, TD)   o_ref: (TB, L, TD)
    x = x_ref[...]
    TB, L, C = x.shape

    # Circular shifts along time (static slices + concat along the sublane dim).
    x_prev = jnp.concatenate([x[:, L - 1:, :], x[:, :L - 1, :]], axis=1)  # x[(t-1) % L]
    x_next = jnp.concatenate([x[:, 1:, :], x[:, :1, :]], axis=1)          # x[(t+1) % L]

    # Fused 3-tap conv: single (TB*L, 3C) @ (3C, TD) matmul, f32 accumulate.
    x_cat = jnp.concatenate([x_prev, x, x_next], axis=-1).reshape(TB * L, 3 * C)
    acc = jnp.dot(x_cat, w_ref[...], preferred_element_type=jnp.float32)
    o_ref[...] = acc.reshape(TB, L, -1).astype(o_ref.dtype)


def _d_tile(D):
    """Largest multiple-of-128 divisor of D (<= 512); full D if D % 128 != 0."""
    if D % 128 != 0:
        return D        # full-extent block -> one masked tail store, no pad/slice
    for t in range(min(D, 512), 0, -128):
        if D % t == 0:
            return t
    return D


def _select_tiles(B, L, C, D, in_isize, out_isize,
                  vmem_budget=16 * 1024 * 1024):
    td = _d_tile(D)
    d_grid = pl.cdiv(D, td)

    def est(tb):
        # Padded-to-(8,128) VMEM accounting, double-buffered blocks + scratch.
        x_blk = tb * _round_up(L, 8) * _round_up(C, 128) * in_isize
        w_blk = _round_up(3 * C, 8) * _round_up(td, 128) * in_isize
        o_blk = tb * _round_up(L, 8) * _round_up(td, 128) * out_isize
        scratch = (tb * _round_up(L, 8) * _round_up(3 * C, 128) * in_isize
                   + tb * _round_up(L, 8) * _round_up(td, 128) * 4)   # f32 acc
        return 2 * (x_blk + w_blk + o_blk) + scratch

    divisors = [d for d in range(1, B + 1) if B % d == 0]
    tb = 1
    for d in divisors:
        if est(d) <= vmem_budget:
            tb = d
    # Keep >= 2 grid steps when possible so both v7x TensorCores get work.
    while tb > 1 and (B // tb) * d_grid < 2:
        tb = max(d for d in divisors if d < tb)
    return tb, td, d_grid


def token_embedding(x, w, *, compute_dtype=jnp.bfloat16, out_dtype=None,
                    vmem_limit_bytes=48 * 1024 * 1024):
    """x: (B, L, c_in);  w: (3, c_in, d_model)  ->  (B, L, d_model)."""
    B, L, C = x.shape
    K, C2, D = w.shape
    assert K == 3 and C2 == C
    if out_dtype is None:
        out_dtype = compute_dtype

    # Fuse the 3 taps into one contraction axis.  Row order of w_cat is
    # [tap0 (t-1) channels | tap1 (t) channels | tap2 (t+1) channels],
    # matching the column order of the in-kernel concat.
    w_cat = w.reshape(3 * C, D).astype(compute_dtype)
    x_c = x.astype(compute_dtype)

    in_isize = jnp.dtype(compute_dtype).itemsize
    out_isize = jnp.dtype(out_dtype).itemsize
    tb, td, d_grid = _select_tiles(B, L, C, D, in_isize, out_isize)
    b_grid = B // tb

    return pl.pallas_call(
        token_embedding_kernel,
        out_shape=jax.ShapeDtypeStruct((B, L, D), out_dtype),
        grid_spec=pl.GridSpec(
            grid=(b_grid, d_grid),
            in_specs=[
                pl.BlockSpec((tb, L, C), lambda b, j: (b, 0, 0)),
                pl.BlockSpec((3 * C, td), lambda b, j: (0, j)),
            ],
            out_specs=pl.BlockSpec((tb, L, td), lambda b, j: (b, 0, j)),
        ),
        compiler_params=pltpu.CompilerParams(
            dimension_semantics=("parallel", "parallel"),
            vmem_limit_bytes=vmem_limit_bytes),
    )(x_c, w_cat)


def init_token_conv_weight(key, c_in, d_model):
    """Kaiming-normal (fan_in, leaky_relu, a=0) init of the Conv1d weight.

    Returns the weight laid out as (3, c_in, d_model), i.e.
    w[k, c, o] == torch_weight[o, c, k].
    """
    fan_in = c_in * 3                      # in_channels * kernel_size
    gain = math.sqrt(2.0)                  # leaky_relu, a=0
    std = gain / math.sqrt(fan_in)
    w_torch = std * jax.random.normal(key, (d_model, c_in, 3), dtype=jnp.float32)
    return jnp.transpose(w_torch, (2, 1, 0))   # (3, c_in, d_model)


def reference_token_embedding(x, w):
    """Plain-JAX f32 reference of the circular conv (same weight layout)."""
    x_prev = jnp.roll(x, 1, axis=1)
    x_next = jnp.roll(x, -1, axis=1)
    return (jnp.einsum("blc,cd->bld", x_prev, w[0])
            + jnp.einsum("blc,cd->bld", x, w[1])
            + jnp.einsum("blc,cd->bld", x_next, w[2]))


if __name__ == "__main__":
    B, L, C_IN, D_MODEL = 2, 8, 4, 32

    key = jax.random.PRNGKey(0)
    k_x, k_w = jax.random.split(key)

    x = jax.random.normal(k_x, (B, L, C_IN), dtype=jnp.float32)
    w = init_token_conv_weight(k_w, C_IN, D_MODEL)

    ref = reference_token_embedding(x, w)

    # Full-precision path: tight check of the conv semantics.
    out_f32 = jax.block_until_ready(
        token_embedding(x, w, compute_dtype=jnp.float32))
    assert out_f32.shape == (B, L, D_MODEL) and out_f32.dtype == jnp.float32
    assert jnp.allclose(out_f32, ref, atol=1e-5, rtol=1e-5)

    # Production bf16 path (halves HBM traffic; f32 MXU accumulate).
    out_bf16 = jax.block_until_ready(token_embedding(x, w))
    assert out_bf16.shape == (B, L, D_MODEL) and out_bf16.dtype == jnp.bfloat16
    assert jnp.allclose(out_bf16.astype(jnp.float32), ref, atol=5e-2, rtol=5e-2)

    print("KERNEL_OK")
</pallas_src>

<mosaic_0001>
module attributes {stable_mosaic.version = 11 : i64} {
  func.func @token_embedding_kernel(%arg0: i32, %arg1: i32, %arg2: memref<1x8x4xf32, #tpu.memory_space<vmem>>, %arg3: memref<12x32xf32, #tpu.memory_space<vmem>>, %arg4: memref<1x8x32xf32, #tpu.memory_space<vmem>>) attributes {dimension_semantics = [#tpu.dimension_semantics<parallel>, #tpu.dimension_semantics<parallel>], iteration_bounds = array<i64: 2, 1>, scalar_prefetch = 0 : i64, scratch_operands = 0 : i64, tpu.core_type = #tpu.core_type<tc>, window_params = [{transform_indices = @transform_0, window_bounds = array<i64: 1, 8, 4>}, {transform_indices = @transform_1, window_bounds = array<i64: 12, 32>}, {transform_indices = @transform_2, window_bounds = array<i64: 1, 8, 32>}]} {
    %c0 = arith.constant 0 : index
    %c0_0 = arith.constant 0 : index
    %c0_1 = arith.constant 0 : index
    %0 = vector.load %arg2[%c0, %c0_0, %c0_1] : memref<1x8x4xf32, #tpu.memory_space<vmem>>, vector<1x8x4xf32>
    %1 = vector.extract_strided_slice %0 {offsets = [0, 7, 0], sizes = [1, 1, 4], strides = [1, 1, 1]} : vector<1x8x4xf32> to vector<1x1x4xf32>
    %2 = vector.extract_strided_slice %0 {offsets = [0, 0, 0], sizes = [1, 7, 4], strides = [1, 1, 1]} : vector<1x8x4xf32> to vector<1x7x4xf32>
    %3 = tpu.concatenate %1, %2 in 1 : vector<1x1x4xf32>, vector<1x7x4xf32> -> vector<1x8x4xf32>
    %4 = vector.extract_strided_slice %0 {offsets = [0, 1, 0], sizes = [1, 7, 4], strides = [1, 1, 1]} : vector<1x8x4xf32> to vector<1x7x4xf32>
    %5 = vector.extract_strided_slice %0 {offsets = [0, 0, 0], sizes = [1, 1, 4], strides = [1, 1, 1]} : vector<1x8x4xf32> to vector<1x1x4xf32>
    %6 = tpu.concatenate %4, %5 in 1 : vector<1x7x4xf32>, vector<1x1x4xf32> -> vector<1x8x4xf32>
    %7 = tpu.concatenate %3, %0, %6 in 2 : vector<1x8x4xf32>, vector<1x8x4xf32>, vector<1x8x4xf32> -> vector<1x8x12xf32>
    %8 = vector.shape_cast %7 : vector<1x8x12xf32> to vector<8x12xf32>
    %c0_2 = arith.constant 0 : index
    %c0_3 = arith.constant 0 : index
    %9 = vector.load %arg3[%c0_2, %c0_3] : memref<12x32xf32, #tpu.memory_space<vmem>>, vector<12x32xf32>
    %cst = arith.constant dense<0.000000e+00> : vector<8x32xf32>
    %10 = tpu.matmul %8, %9, %cst {dimension_numbers = #tpu.dot_dimension_numbers<[1], [0], [0], [1], [0, 0, 1, 1], [], []>} : vector<8x12xf32>, vector<12x32xf32>, vector<8x32xf32> -> vector<8x32xf32>
    %11 = vector.shape_cast %10 : vector<8x32xf32> to vector<1x8x32xf32>
    %c0_4 = arith.constant 0 : index
    %c0_5 = arith.constant 0 : index
    %c0_6 = arith.constant 0 : index
    %12 = vector.load %arg4[%c0_4, %c0_5, %c0_6] : memref<1x8x32xf32, #tpu.memory_space<vmem>>, vector<1x8x32xf32>
    tpu.vector_store %arg4[%c0_4, %c0_5, %c0_6], %11 {strides = array<i32>} : memref<1x8x32xf32, #tpu.memory_space<vmem>>, vector<1x8x32xf32>,
    return
  }
  func.func @transform_0(%arg0: i32, %arg1: i32) -> (i32, i32, i32) {
    %c0_i32 = arith.constant 0 : i32
    %c0_i32_0 = arith.constant 0 : i32
    %c0_i32_1 = arith.constant 0 : i32
    return %arg0, %c0_i32, %c0_i32_0 : i32, i32, i32
  }
  func.func @transform_1(%arg0: i32, %arg1: i32) -> (i32, i32) {
    %c0_i32 = arith.constant 0 : i32
    %c0_i32_0 = arith.constant 0 : i32
    return %c0_i32, %arg1 : i32, i32
  }
  func.func @transform_2(%arg0: i32, %arg1: i32) -> (i32, i32, i32) {
    %c0_i32 = arith.constant 0 : i32
    %c0_i32_0 = arith.constant 0 : i32
    return %arg0, %c0_i32, %arg1 : i32, i32, i32
  }
}

</mosaic_0001>

<llo_original>
// kernel: tpu_custom_call.1
$region0: #{tpu_custom_call.1}
  #allocation0 [shape = 'u32[]', space=smem, size = 0x4, offset = 0x4, fixed_abs, tag = 'smem constant byte address 0x4 - core index']
  #allocation1 [shape = 'u32[144,128]{1,0:T(1,128)}', space=vmem, size = 0x12000, scoped, tag = 'internal scratch']
  %s0 = inlined_call_operand.vmem [shape: f32[2,8,4], index: 0, kind: input, shape index: {}]
  %s1 = inlined_call_operand.vmem [shape: f32[12,32], index: 1, kind: input, shape index: {}]
  %s2 = inlined_call_operand.hbm [shape: f32[2,8,32], index: 2, kind: output, shape index: {}]
  %s3 = sld [smem:[#allocation0]]
  $region41: #{tpu_custom_call.1} parent=0
    _
  %s5 = ssub.s32 1, %s3
  %s6 = scalar_select 0, %s5, %s3
  $region1: #{tpu_custom_call.1} parent=0
    #allocation2 [shape = 'u8[8192]{0}', space=vmem, size = 0x2000, scoped, tag = 'output window, operand 0']
    #allocation3 [shape = 's32[2]{0}', space=sflag, size = 0x8, scoped, tag = 'scoped memory for tpu_custom_call.1']
    %7 = vsyncpa [#allocation3], 0
    %s8 = scalar_lea.sflag [#allocation3], 1
    %9 = vsyncpa %s8, 0
    loop: start=0, step=1, limit=4
    $region2: #{tpu_custom_call.1} parent=1 // loop_pre_header
      _
    $region3: #{tpu_custom_call.1} parent=1 // loop_header
      %s11 = sphi 0, %s15
      %p12 = scmp.ge.s32.totalorder %s11, 4
      %s18 = sphi 0, %s30
      %s19 = sphi 0, %s26
      %s20 = sphi 0, %s18
      %s21 = sphi 0, %s19
      %s22 = sphi 0, %s20
      %s23 = sphi 0, %s21
      %s33 = sphi 0, %s35
      %s36 = sphi 0, %s33
      %s37 = sphi 0, %s36
      %s53 = sphi 0, %s37
      %s59 = sphi 0, %s61
      %s62 = sphi 0, %s59
      %s63 = sphi 0, %s62
      %s79 = sphi 0, %s63
      %s87 = sphi 0, %s89
      %s90 = sphi 0, %s87
      %s91 = sphi 0, %s90
      %s107 = sphi 0, %s91
    $region4: #{tpu_custom_call.1} parent=1 // loop_header_branch
      %14 = sbr.rel (%p12) target = $region8
    $region5: #{tpu_custom_call.1} parent=1 // loop_body
      %s16 = ssub.s32 %s11, 1
      %s17 = ssub.s32 %s11, 2
      %s24 = sadd.s32 1, %s19
      %p25 = scmp.ge.s32.totalorder %s24, 1
      %s26 = scalar_select %p25, 0, %s24
      %s27 = sadd.s32 1, %s18
      %s28 = scalar_select %p25, %s27, %s18
      %p29 = scmp.ge.s32.totalorder %s28, 2
      %s30 = scalar_select %p29, 0, %s28
      %s31 = ssub.s32 %s18, %s30
      %p32 = scmp.eq.s32.totalorder %s31, 0
      %s34 = sadd.s32 %s33, 1
      %s35 = scalar_select %p32, %s33, %s34
      %p38 = pneg %p32
      %p39 = scmp.eq.s32.totalorder %s11, 1
      %p40 = por %p38, %p39
      %p41 = scmp.ne.s32.totalorder %s33, %s36
      %p42 = scmp.eq.s32.totalorder %s11, 0
      %p43 = por %p41, %p42
      %p44 = scmp.ne.s32.totalorder %s33, %s36
      %p45 = scmp.eq.s32.totalorder %s16, 1
      %p46 = por %p44, %p45
      %p47 = scmp.ne.s32.totalorder %s36, %s37
      %p48 = scmp.eq.s32.totalorder %s16, 0
      %p49 = por %p47, %p48
      %p50 = scmp.ne.s32.totalorder %s36, %s37
      %p51 = scmp.eq.s32.totalorder %s17, 1
      %p52 = por %p50, %p51
      %p54 = scmp.ne.s32.totalorder %s37, %s53
      %p55 = scmp.eq.s32.totalorder %s17, 0
      %p56 = por %p54, %p55
      %s57 = ssub.s32 %s19, %s26
      %p58 = scmp.eq.s32.totalorder %s57, 0
      %s60 = sadd.s32 %s59, 1
      %s61 = scalar_select %p58, %s59, %s60
      %p64 = pneg %p58
      %p65 = scmp.eq.s32.totalorder %s11, 1
      %p66 = por %p64, %p65
      %p67 = scmp.ne.s32.totalorder %s59, %s62
      %p68 = scmp.eq.s32.totalorder %s11, 0
      %p69 = por %p67, %p68
      %p70 = scmp.ne.s32.totalorder %s59, %s62
      %p71 = scmp.eq.s32.totalorder %s16, 1
      %p72 = por %p70, %p71
      %p73 = scmp.ne.s32.totalorder %s62, %s63
      %p74 = scmp.eq.s32.totalorder %s16, 0
      %p75 = por %p73, %p74
      %p76 = scmp.ne.s32.totalorder %s62, %s63
      %p77 = scmp.eq.s32.totalorder %s17, 1
      %p78 = por %p76, %p77
      %p80 = scmp.ne.s32.totalorder %s63, %s79
      %p81 = scmp.eq.s32.totalorder %s17, 0
      %p82 = por %p80, %p81
      %s83 = ssub.s32 %s18, %s30
      %s84 = ssub.s32 %s19, %s26
      %s85 = sor.u32 %s83, %s84
      %p86 = scmp.eq.s32.totalorder %s85, 0
      %s88 = sadd.s32 %s87, 1
      %s89 = scalar_select %p86, %s87, %s88
      %p92 = pneg %p86
      %p93 = scmp.eq.s32.totalorder %s11, 1
      %p94 = por %p92, %p93
      %p95 = scmp.ne.s32.totalorder %s87, %s90
      %p96 = scmp.eq.s32.totalorder %s11, 0
      %p97 = por %p95, %p96
      %p98 = scmp.ne.s32.totalorder %s87, %s90
      %p99 = scmp.eq.s32.totalorder %s16, 1
      %p100 = por %p98, %p99
      %p101 = scmp.ne.s32.totalorder %s90, %s91
      %p102 = scmp.eq.s32.totalorder %s16, 0
      %p103 = por %p101, %p102
      %p104 = scmp.ne.s32.totalorder %s90, %s91
      %p105 = scmp.eq.s32.totalorder %s17, 1
      %p106 = por %p104, %p105
      %p108 = scmp.ne.s32.totalorder %s91, %s107
      %p109 = scmp.eq.s32.totalorder %s17, 0
      %p110 = por %p108, %p109
      %p111 = scmp.le.s32.totalorder 1, %s11
      %p112 = scmp.lt.s32.totalorder %s11, 3
      %p113 = pnand %p111, %p112
      %p114 = pneg %p113
      // Predicated region
      $region9: #{tpu_custom_call.1} parent=5 // pred_check
        _
      $region10: #{tpu_custom_call.1} parent=5 // pred_check_branch
        %116 = sbr.rel (%p113) target = $region12
      $region11: #{tpu_custom_call.1} parent=5 // pred_region
        %s117 = ssub.s32 %s11, 1
        // Predicated region
        $region13: #{tpu_custom_call.1} parent=11 // pred_check
          %p118 = pneg %p75
        $region14: #{tpu_custom_call.1} parent=11 // pred_check_branch
          %120 = sbr.rel (%p118) target = $region16
        $region15: #{tpu_custom_call.1} parent=11 // pred_region
          %p121 = scmp.lt.s32.totalorder %s21, 0
          %s122 = scalar_select %p121, %s21, 0
          %s123 = smul.addr %s122, 8
          %s124 = scalar_lea.vmem %s1, %s123
        $region16: #{tpu_custom_call.1} parent=11 // pred_fallthru
          _
      $region12: #{tpu_custom_call.1} parent=5 // pred_fallthru
        _
      %p125 = scmp.lt.s32.totalorder %s11, 2
      // Predicated region
      $region17: #{tpu_custom_call.1} parent=5 // pred_check
        %p126 = pneg %p125
      $region18: #{tpu_custom_call.1} parent=5 // pred_check_branch
        %128 = sbr.rel (%p126) target = $region20
      $region19: #{tpu_custom_call.1} parent=5 // pred_region
        // Predicated region
        $region21: #{tpu_custom_call.1} parent=19 // pred_check
          %p129 = pneg %p43
        $region22: #{tpu_custom_call.1} parent=19 // pred_check_branch
          %131 = sbr.rel (%p129) target = $region24
        $region23: #{tpu_custom_call.1} parent=19 // pred_region
          %p132 = scmp.lt.s32.totalorder %s18, 1
          %s133 = scalar_select %p132, %s18, 1
          %s134 = smul.addr %s133, 8
          %s135 = scalar_lea.vmem %s0, %s134
        $region24: #{tpu_custom_call.1} parent=19 // pred_fallthru
          _
      $region20: #{tpu_custom_call.1} parent=5 // pred_fallthru
        _
      %p136 = scmp.le.s32.totalorder 1, %s11
      %p137 = scmp.lt.s32.totalorder %s11, 3
      %p138 = pnand %p136, %p137
      %p139 = pneg %p138
      // Predicated region
      $region25: #{tpu_custom_call.1} parent=5 // pred_check
        _
      $region26: #{tpu_custom_call.1} parent=5 // pred_check_branch
        %141 = sbr.rel (%p138) target = $region28
      $region27: #{tpu_custom_call.1} parent=5 // pred_region
        %s142 = ssub.s32 %s11, 1
        %p143 = scmp.lt.s32.totalorder %s20, 1
        %s144 = scalar_select %p143, %s20, 1
        %s145 = smul.addr %s144, 8
        %s146 = scalar_lea.vmem %s0, %s145
        %p147 = pneg %p49
        %p148 = pneg %p46
        %p149 = scmp.lt.s32.totalorder %s21, 0
        %s150 = scalar_select %p149, %s21, 0
        %s151 = smul.addr %s150, 8
        %s152 = scalar_lea.vmem %s1, %s151
        %p153 = pneg %p75
        %p154 = pneg %p72
        %p155 = pneg %p103
        %p156 = pneg %p100
        %s157 = sand.u32 %s90, 1
        %s158 = scalar_lea.sflag [#allocation3], %s157
        %s159 = sand.u32 %s90, 1
        %s160 = smul.addr %s159, 8
        %s161 = scalar_lea.vmem [#allocation2], %s160
        %p162 = scmp.lt.s32.totalorder %s20, 1
        %s163 = scalar_select %p162, %s20, 1
        %s164 = smul.addr %s163, 8
        %s165 = scalar_lea.vmem %s0, %s164
        %p166 = scmp.lt.s32.totalorder %s21, 0
        %s167 = scalar_select %p166, %s21, 0
        %s168 = smul.addr %s167, 8
        %s169 = scalar_lea.vmem %s1, %s168
        %v170 = vld [vmem:[%s165] sm:$0xff]
        %v172 = vrot.slane %v170, 7
        %vm174 = vcmask 1040384
        %v175 = vsel %vm174, %v172, %v172
        %v176 = vrot.slane %v170, 1
        %vm178 = vcmask 1046528
        %v179 = vsel %vm178, %v176, %v176
        %180 = vrot.lane.b32.xlu0 %v170, 4
        %v181 = vpop.permute.xlu0 %180
        %184 = vrot.lane.b32.xlu0 %v179, 8
        %v185 = vpop.permute.xlu0 %184
        %vm187 = vcmask 31744
        %v188 = vsel %vm187, %v175, %v181
        %vm189 = vcmask 64512
        %v190 = vsel %vm189, %v188, %v185
        %v191 = vld [vmem:[%s169] sm:$0xff]
        %v192 = vld [vmem:[%s169 + $0x8] sm:$0xf]
        %vm193 = vcmask 97280
        %v195 = vsel %vm193, %v190, 0
        %vm197 = vcmask 1043456
        %v199 = vsel %vm197, %v192, 0
        %201 = vmatprep.subr.mxu0 0.0
        %202 = vmatpush1.msra.mxu0 %v191
        %203 = vmatprep.subr.mxu0 0.0
        %204 = vmatpush1.msra.mxu0 %v199
        %205 = vmatprep.subr.mxu0 0.0
        %206 = vmatpush1.msra.mxu0 0.0
        %207 = vmatprep.subr.mxu0 0.0
        %208 = vmatpush1.msra.mxu0 0.0
        %209 = vmatprep.subr.mxu0 0.0
        %210 = vmatpush1.msra.mxu0 0.0
        %211 = vmatprep.subr.mxu0 0.0
        %212 = vmatpush1.msra.mxu0 0.0
        %213 = vmatprep.subr.mxu0 0.0
        %214 = vmatpush1.msra.mxu0 0.0
        %215 = vmatprep.subr.mxu0 0.0
        %216 = vmatpush1.msra.mxu0 0.0
        %217 = vmatprep.subr.mxu0 0.0
        %218 = vmatpush1.msra.mxu0 0.0
        %219 = vmatprep.subr.mxu0 0.0
        %220 = vmatpush1.msra.mxu0 0.0
        %221 = vmatprep.subr.mxu0 0.0
        %222 = vmatpush1.msra.mxu0 0.0
        %223 = vmatprep.subr.mxu0 0.0
        %224 = vmatpush1.msra.mxu0 0.0
        %225 = vmatprep.subr.mxu0 0.0
        %226 = vmatpush1.msra.mxu0 0.0
        %227 = vmatprep.subr.mxu0 0.0
        %228 = vmatpush1.msra.mxu0 0.0
        %229 = vmatprep.subr.mxu0 0.0
        %230 = vmatpush1.msra.mxu0 0.0
        %231 = vmatprep.subr.mxu0 0.0
        %232 = vmatpush1.msra.mxu0 0.0
        %233 = vmatprep.subr.mxu0 0.0
        %234 = vmatpush1.msra.mxu0 0.0
        %235 = vmatprep.subr.mxu0 0.0
        %236 = vmatpush1.msra.mxu0 0.0
        %237 = vmatprep.subr.mxu0 0.0
        %238 = vmatpush1.msra.mxu0 0.0
        %239 = vmatprep.subr.mxu0 0.0
        %240 = vmatpush1.msra.mxu0 0.0
        %241 = vmatprep.subr.mxu0 0.0
        %242 = vmatpush1.msra.mxu0 0.0
        %243 = vmatprep.subr.mxu0 0.0
        %244 = vmatpush1.msra.mxu0 0.0
        %245 = vmatprep.subr.mxu0 0.0
        %246 = vmatpush1.msra.mxu0 0.0
        %247 = vmatprep.subr.mxu0 0.0
        %248 = vmatpush1.msra.mxu0 0.0
        %249 = vmatprep.subr.mxu0 0.0
        %250 = vmatpush1.msra.mxu0 0.0
        %251 = vmatprep.subr.mxu0 0.0
        %252 = vmatpush1.msra.mxu0 0.0
        %253 = vmatprep.subr.mxu0 0.0
        %254 = vmatpush1.msra.mxu0 0.0
        %255 = vmatprep.subr.mxu0 0.0
        %256 = vmatpush1.msra.mxu0 0.0
        %257 = vmatprep.subr.mxu0 0.0
        %258 = vmatpush1.msra.mxu0 0.0
        %259 = vmatprep.subr.mxu0 0.0
        %260 = vmatpush1.msra.mxu0 0.0
        %261 = vmatprep.subr.mxu0 0.0
        %262 = vmatpush1.msra.mxu0 0.0
        %263 = vmatprep.subr.mxu0 0.0
        %264 = vmatpush1.msra.mxu0 0.0
        %265 = vmatprep.mubr.f32.mxu0 0.0
        %266 = vmatmul.mubr.f32.gmra.mrb[0].mxu0 %v195
        %v267 = vpop.f32.mrb[0].mxu0
        %v268 = vadd.f32 0.0, %v267
        %v269 = vpop.f32.mrb[0].mxu0
        %270 = vdwg.mxu0
        %vm271 = vcmask 261120
        %272 = vst.msk [vmem:[%s161] sm:$0xff] %vm271, %v268
        %s273 = sand.u32 %s90, 1
        %s274 = scalar_lea.sflag [#allocation3], %s273
        %s275 = sand.u32 %s90, 1
        %s276 = smul.addr %s275, 8
        %s277 = scalar_lea.vmem [#allocation2], %s276
        // Predicated region
        $region29: #{tpu_custom_call.1} parent=27 // pred_check
          %p278 = pneg %p100
        $region30: #{tpu_custom_call.1} parent=27 // pred_check_branch
          %280 = sbr.rel (%p278) target = $region32
        $region31: #{tpu_custom_call.1} parent=27 // pred_region
          %s282 = ssub.s32 128, 128
          %283 = vsyncadd %s274, %s282
          %s284 = sadd.s32 %s21, %s20
          %s285 = smul.addr %s284, 128
          %s286 = scalar_lea.hbm %s2, %s285
          %s288 = sshll.u32 %s277, 4
          %s289 = int_to_ptr.vmem [resolvable:$true] %s288
          %291 = dma.vmem_to_hbm [thread:$0]  %s289, 128, %s286, %s274
        $region32: #{tpu_custom_call.1} parent=27 // pred_fallthru
          _
      $region28: #{tpu_custom_call.1} parent=5 // pred_fallthru
        _
      %p292 = scmp.le.s32.totalorder 2, %s11
      // Predicated region
      $region33: #{tpu_custom_call.1} parent=5 // pred_check
        %p293 = pneg %p292
      $region34: #{tpu_custom_call.1} parent=5 // pred_check_branch
        %295 = sbr.rel (%p293) target = $region36
      $region35: #{tpu_custom_call.1} parent=5 // pred_region
        %s296 = ssub.s32 %s11, 2
        // Predicated region
        $region37: #{tpu_custom_call.1} parent=35 // pred_check
          %p297 = pneg %p106
        $region38: #{tpu_custom_call.1} parent=35 // pred_check_branch
          %299 = sbr.rel (%p297) target = $region40
        $region39: #{tpu_custom_call.1} parent=35 // pred_region
          %s300 = sand.u32 %s91, 1
          %s301 = scalar_lea.sflag [#allocation3], %s300
          %s302 = sand.u32 %s91, 1
          %s303 = smul.addr %s302, 8
          %s304 = scalar_lea.vmem [#allocation2], %s303
          %305 = dma.done %s301, 128
        $region40: #{tpu_custom_call.1} parent=35 // pred_fallthru
          _
      $region36: #{tpu_custom_call.1} parent=5 // pred_fallthru
        _
    $region6: #{tpu_custom_call.1} parent=1 // loop_footer
      %s15 = sadd.s32 1, %s11
    $region7: #{tpu_custom_call.1} parent=1 // loop_footer_branch
      %10 = sbr.rel target = $region3
    $region8: #{tpu_custom_call.1} parent=1 // loop_exit
      _
    %306 = vsyncpa [#allocation3], 1
    %s307 = scalar_lea.sflag [#allocation3], 1
    %308 = vsyncpa %s307, 1

</llo_original>
